<compile_context>
chip_gen: v6e
topology: v6e:2x2x1
jax: 0.10.0
libtpu: 0.0.40
codegen_flags: <defaults>
</compile_context>

<pallas_src>
import functools

import numpy as np
import jax
import jax.numpy as jnp
from jax import lax
from jax.experimental import pallas as pl
from jax.experimental.pallas import tpu as pltpu


# --------------------------------------------------------------------------
# tiling / VMEM planning helpers
# --------------------------------------------------------------------------

def _round_up(x, m):
    return ((x + m - 1) // m) * m


def _vmem_capacity_bytes():
    try:
        info = pltpu.get_tpu_info()
        for attr in ("vmem_capacity_bytes", "vmem_bytes"):
            cap = getattr(info, attr, None)
            if cap:
                return int(cap)
    except Exception:
        pass
    return 64 << 20   # conservative default: v7x per-TensorCore VMEM


def _vmem_estimate(tm, bp, dp, rhs_buffers):
    return (rhs_buffers * bp * dp * 4          # resident full-embedding RHS block
            + rhs_buffers * max(bp, 128) * 4   # column squared norms
            + 2 * tm * bp                      # packed int8 mask (double buffered)
            + 8 * tm * bp * 4                  # f32/i32 (tm, bp) temporaries
            + 2 * tm * 8 * 4                   # packed output
            + (2 << 20))                       # slack


def _plan_tiling(B, D, tm_override=None):
    dp = _round_up(max(D, 1), 128)
    vmem_cap = _vmem_capacity_bytes()
    budget = max(vmem_cap - (12 << 20), 16 << 20)

    if tm_override is not None:
        tm = _round_up(min(int(tm_override), B), 8)
        return tm, _round_up(B, tm), dp, budget

    if B <= 8:
        tm = _round_up(max(B, 1), 8)
        return tm, tm, dp, budget

    # big row tiles on 128-MiB-VMEM chips (v5e/v6e) with big batches
    tm = 256 if (vmem_cap >= (100 << 20) and B >= 512) else 128

    bp = _round_up(B, 8)
    if bp <= tm:
        # at least two grid steps so both v7x TensorCores get work
        tm = _round_up((bp + 1) // 2, 8)
    bp = _round_up(B, tm)

    # shrink the row tile until the live footprint fits the per-core budget
    while tm > 8 and _vmem_estimate(tm, bp, dp, 2) > budget:
        tm = max(8, tm // 2)
        bp = _round_up(B, tm)
    return tm, bp, dp, budget


# --------------------------------------------------------------------------
# kernel
# --------------------------------------------------------------------------

def _make_miner_kernel(tm, use_bf16_gram):
    def _miner_kernel(emb_ref, colsq_ref, mask_ref, out_ref):
        # full (bp, dp) embedding block is VMEM-resident; slice this step's rows
        row0 = pl.multiple_of(pl.program_id(0) * tm, tm)
        x = emb_ref[pl.ds(row0, tm), :]                       # (tm, dp) f32
        xa = emb_ref[...]                                     # (bp, dp) f32
        col_sq = colsq_ref[...]                               # (1, bp) f32

        # --- squared pairwise Euclidean distances for this row tile ---
        row_sq = jnp.sum(x * x, axis=1, keepdims=True)        # (tm, 1)
        if use_bf16_gram:
            # TODO(synk): bf16 Gram trades accuracy for MXU speed on v6e/v7x.
            lhs, rhs = x.astype(jnp.bfloat16), xa.astype(jnp.bfloat16)
        else:
            lhs, rhs = x, xa
        gram = lax.dot_general(lhs, rhs, (((1,), (1,)), ((), ())),
                               preferred_element_type=jnp.float32)  # (tm, bp)
        d2 = jnp.maximum(row_sq + col_sq - 2.0 * gram, 0.0)

        # --- bit-packed masks: bit0 = positive, bit1 = negative ---
        m = mask_ref[...]                                     # (tm, bp) int8
        pos = (m & 1) != 0
        neg = (m & 2) != 0

        # hardest positive: masked max on d2 (sentinel -1), first argmax
        mp2 = jnp.where(pos, d2, -1.0)
        hp2 = jnp.max(mp2, axis=1, keepdims=True)             # (tm, 1)

        # hardest negative: masked min on d2 (sentinel +inf), first argmin
        mn2 = jnp.where(neg, d2, jnp.float32(jnp.inf))
        hn2 = jnp.min(mn2, axis=1, keepdims=True)             # (tm, 1)

        bp = d2.shape[1]
        col_ids = lax.broadcasted_iota(jnp.int32, (1, bp), 1)
        hp_idx = jnp.min(jnp.where(mp2 == hp2, col_ids, bp), axis=1, keepdims=True)
        hn_idx = jnp.min(jnp.where(mn2 == hn2, col_ids, bp), axis=1, keepdims=True)

        # rows with >=1 positive AND >=1 negative, derived from the reductions
        keep = (hp2 >= 0.0) & (hn2 < jnp.inf)

        # sqrt only on the per-row results (matches torch: no-pos rows -> 0,
        # no-neg rows -> +inf)
        hp = jnp.sqrt(jnp.maximum(hp2, 0.0))
        hn = jnp.sqrt(hn2)
        zero = jnp.zeros_like(hp)

        # single packed output slab: [hp, hn, hp_idx, hn_idx, keep, 0, 0, 0]
        out_ref[...] = jnp.concatenate(
            [hp, hn,
             hp_idx.astype(jnp.float32), hn_idx.astype(jnp.float32),
             keep.astype(jnp.float32), zero, zero, zero], axis=1)   # (tm, 8)

    return _miner_kernel


# --------------------------------------------------------------------------
# pallas_call wrapper (cached per configuration)
# --------------------------------------------------------------------------

_HAS_BUFFERED = hasattr(pl, "Buffered")
_SINGLE_BUFFER_OK = None   # learned at first call (None = unknown)


@functools.lru_cache(maxsize=None)
def _build_mine_fn(B, D, tm, bp, dp, use_bf16_gram, single_buffer):
    rhs_kwargs = dict(pipeline_mode=pl.Buffered(1)) if single_buffer else {}

    rhs_buffers = 1 if single_buffer else 2
    budget = max(_vmem_capacity_bytes() - (12 << 20), 16 << 20)
    vmem_limit = int(min(max(_vmem_estimate(tm, bp, dp, rhs_buffers), 24 << 20),
                         budget))

    call = pl.pallas_call(
        _make_miner_kernel(tm, use_bf16_gram),
        out_shape=jax.ShapeDtypeStruct((bp, 8), jnp.float32),
        grid=(bp // tm,),
        in_specs=[
            pl.BlockSpec((bp, dp), lambda i: (0, 0), **rhs_kwargs),   # full embeddings
            pl.BlockSpec((1, bp), lambda i: (0, 0), **rhs_kwargs),    # column norms
            pl.BlockSpec((tm, bp), lambda i: (i, 0)),                 # packed masks
        ],
        out_specs=pl.BlockSpec((tm, 8), lambda i: (i, 0)),
        compiler_params=pltpu.CompilerParams(
            dimension_semantics=("parallel",),
            vmem_limit_bytes=vmem_limit),
    )

    def _fn(embeddings, positives_mask, negatives_mask):
        emb = jnp.asarray(embeddings, jnp.float32)
        pos_b = jnp.asarray(positives_mask) != 0
        neg_b = jnp.asarray(negatives_mask) != 0
        # bit0 = positive, bit1 = negative: halves the O(B^2) mask HBM stream
        packed = pos_b.astype(jnp.int8) | (neg_b.astype(jnp.int8) << 1)

        emb = jnp.pad(emb, ((0, bp - B), (0, dp - D)))
        packed = jnp.pad(packed, ((0, bp - B), (0, bp - B)))
        col_sq = jnp.sum(emb * emb, axis=1)[None, :]            # (1, bp)

        out = call(emb, col_sq, packed)[:B]                     # (B, 8)
        hp, hn = out[:, 0], out[:, 1]
        stats = jnp.stack([jnp.max(hp), jnp.max(hn),
                           jnp.mean(hp), jnp.mean(hn),
                           jnp.min(hp), jnp.min(hn)])
        return out, stats

    return jax.jit(_fn)


# --------------------------------------------------------------------------
# module-level wrapper (mirrors the PyTorch module)
# --------------------------------------------------------------------------

class BatchHardTripletMiner:
    """JAX/Pallas port of the PyTorch BatchHardTripletMiner (Euclidean distance)."""

    _STAT_KEYS = ("max_pos_pair_dist", "max_neg_pair_dist",
                  "mean_pos_pair_dist", "mean_neg_pair_dist",
                  "min_pos_pair_dist", "min_neg_pair_dist")

    def __init__(self, tm=None, use_bf16_gram: bool = False):
        # TODO(synk): the reference takes an abstract BaseDistance; L2 is built in.
        self._tm = tm
        self._use_bf16_gram = bool(use_bf16_gram)
        self._stats = {k: 0.0 for k in self._STAT_KEYS}

    @property
    def stats(self):
        return self._stats

    def __call__(self, embeddings, positives_mask, negatives_mask):
        global _SINGLE_BUFFER_OK
        B, D = int(embeddings.shape[0]), int(embeddings.shape[1])
        tm, bp, dp, _ = _plan_tiling(B, D, self._tm)

        if not _HAS_BUFFERED or _SINGLE_BUFFER_OK is False:
            attempts = (False,)
        elif _SINGLE_BUFFER_OK is True:
            attempts = (True,)
        else:
            attempts = (True, False)

        out = stats = None
        last_err = None
        for single_buffer in attempts:
            try:
                fn = _build_mine_fn(B, D, tm, bp, dp, self._use_bf16_gram,
                                    single_buffer)
                out, stats = fn(embeddings, positives_mask, negatives_mask)
                _SINGLE_BUFFER_OK = single_buffer
                last_err = None
                break
            except Exception as e:   # fall back to default double buffering
                last_err = e
                _SINGLE_BUFFER_OK = False
        if last_err is not None:
            raise last_err

        # stats of last forward pass (computed on device, 6 scalars transferred)
        stats_np = np.asarray(jax.block_until_ready(stats))
        self._stats = {k: float(v) for k, v in zip(self._STAT_KEYS, stats_np)}

        # dynamic-shape triplet compaction (host-side, like torch boolean indexing)
        out_np = np.asarray(out)
        keep = out_np[:, 4] > 0.5
        hp_i = out_np[:, 2].astype(np.int32)
        hn_i = out_np[:, 3].astype(np.int32)
        a = np.arange(B, dtype=np.int32)[keep]
        p = hp_i[keep]
        n = hn_i[keep]
        return a, p, n


# --------------------------------------------------------------------------
# reference + tests
# --------------------------------------------------------------------------

def _reference_numpy(emb, pos, neg):
    """Pure-numpy reference mirroring the PyTorch module (sanity check)."""
    emb = np.asarray(emb, np.float64)
    d2 = np.sum((emb[:, None, :] - emb[None, :, :]) ** 2, axis=-1)
    dist = np.sqrt(np.maximum(d2, 0.0))
    pos = np.asarray(pos, bool)
    neg = np.asarray(neg, bool)
    mp = np.where(pos, dist, 0.0)
    hp = mp.max(1)
    hp_i = mp.argmax(1)
    mn = np.where(neg, dist, np.inf)
    hn = mn.min(1)
    hn_i = mn.argmin(1)
    keep = pos.any(1) & neg.any(1)
    a = np.arange(dist.shape[0])[keep]
    return a, hp_i[keep], hn_i[keep], hp, hn


def _make_inputs(key, B, D, n_classes=3):
    k_emb, k_lab = jax.random.split(key)
    embeddings = jax.random.normal(k_emb, (B, D), dtype=jnp.float32)
    labels = jax.random.randint(k_lab, (B,), 0, n_classes)
    eye = jnp.eye(B, dtype=bool)
    same = labels[:, None] == labels[None, :]
    positives_mask = same & ~eye
    negatives_mask = ~same
    return embeddings, positives_mask, negatives_mask


if __name__ == "__main__":
    key = jax.random.PRNGKey(0)

    # --- test 1: small batch, single grid step ---
    B, D = 8, 32
    embeddings, positives_mask, negatives_mask = _make_inputs(key, B, D)

    miner = BatchHardTripletMiner()
    a, p, n = miner(embeddings, positives_mask, negatives_mask)

    a_ref, p_ref, n_ref, hp_ref, hn_ref = _reference_numpy(
        embeddings, positives_mask, negatives_mask)
    assert np.array_equal(a, a_ref), (a, a_ref)
    assert np.array_equal(p, p_ref), (p, p_ref)
    assert np.array_equal(n, n_ref), (n, n_ref)
    assert abs(miner.stats["mean_pos_pair_dist"] - float(hp_ref.mean())) < 1e-3
    hn_mean_ref = float(hn_ref.mean())
    if np.isfinite(hn_mean_ref):
        assert abs(miner.stats["mean_neg_pair_dist"] - hn_mean_ref) < 1e-3
    else:
        assert not np.isfinite(miner.stats["mean_neg_pair_dist"])

    # --- test 2: row padding + feature padding + multi-step grid (auto plan) ---
    B2, D2 = 40, 32   # auto plan: rows padded, D padded to 128, grid of 2 steps
    emb2, pos2, neg2 = _make_inputs(jax.random.PRNGKey(1), B2, D2)
    miner2 = BatchHardTripletMiner()
    a2, p2, n2 = miner2(emb2, pos2, neg2)
    a2_ref, p2_ref, n2_ref, _, _ = _reference_numpy(emb2, pos2, neg2)
    assert np.array_equal(a2, a2_ref), (a2, a2_ref)
    assert np.array_equal(p2, p2_ref), (p2, p2_ref)
    assert np.array_equal(n2, n2_ref), (n2, n2_ref)

    print("KERNEL_OK")
</pallas_src>

<mosaic_0001>
module attributes {stable_mosaic.version = 11 : i64} {
  func.func @_miner_kernel(%arg0: i32, %arg1: memref<8x128xf32, #tpu.memory_space<vmem>>, %arg2: memref<1x8xf32, #tpu.memory_space<vmem>>, %arg3: memref<8x8xi8, #tpu.memory_space<vmem>>, %arg4: memref<8x8xf32, #tpu.memory_space<vmem>>) attributes {dimension_semantics = [#tpu.dimension_semantics<parallel>], iteration_bounds = array<i64: 1>, scalar_prefetch = 0 : i64, scratch_operands = 0 : i64, tpu.core_type = #tpu.core_type<tc>, window_params = [{pipeline_mode = #tpu.pipeline_mode<synchronous>, transform_indices = @transform_0, window_bounds = array<i64: 8, 128>}, {pipeline_mode = #tpu.pipeline_mode<synchronous>, transform_indices = @transform_1, window_bounds = array<i64: 1, 8>}, {transform_indices = @transform_2, window_bounds = array<i64: 8, 8>}, {transform_indices = @transform_3, window_bounds = array<i64: 8, 8>}]} {
    %c8_i32 = arith.constant 8 : i32
    %0 = arith.muli %arg0, %c8_i32 : i32
    %1 = tpu.assume_multiple %0, 8 : i32
    %2 = arith.index_cast %1 : i32 to index
    %c0 = arith.constant 0 : index
    %3 = vector.load %arg1[%2, %c0] : memref<8x128xf32, #tpu.memory_space<vmem>>, vector<8x128xf32>
    %c0_0 = arith.constant 0 : index
    %c0_1 = arith.constant 0 : index
    %4 = vector.load %arg1[%c0_0, %c0_1] : memref<8x128xf32, #tpu.memory_space<vmem>>, vector<8x128xf32>
    %c0_2 = arith.constant 0 : index
    %c0_3 = arith.constant 0 : index
    %5 = vector.load %arg2[%c0_2, %c0_3] : memref<1x8xf32, #tpu.memory_space<vmem>>, vector<1x8xf32>
    %6 = arith.mulf %3, %3 : vector<8x128xf32>
    %cst = arith.constant dense<0.000000e+00> : vector<8xf32>
    %7 = vector.multi_reduction <add>, %6, %cst [1] : vector<8x128xf32> to vector<8xf32>
    %8 = vector.shape_cast %7 : vector<8xf32> to vector<8x1xf32>
    %cst_4 = arith.constant dense<0.000000e+00> : vector<8x8xf32>
    %9 = tpu.matmul %3, %4, %cst_4 {dimension_numbers = #tpu.dot_dimension_numbers<[1], [1], [0], [0], [0, 0, 1, 0], [], []>} : vector<8x128xf32>, vector<8x128xf32>, vector<8x8xf32> -> vector<8x8xf32>
    %10 = vector.broadcast %8 : vector<8x1xf32> to vector<8x8xf32>
    %11 = vector.broadcast %5 : vector<1x8xf32> to vector<8x8xf32>
    %12 = arith.addf %10, %11 : vector<8x8xf32>
    %cst_5 = arith.constant 2.000000e+00 : f32
    %13 = vector.broadcast %cst_5 : f32 to vector<8x8xf32>
    %14 = arith.mulf %13, %9 : vector<8x8xf32>
    %15 = arith.subf %12, %14 : vector<8x8xf32>
    %cst_6 = arith.constant 0.000000e+00 : f32
    %16 = vector.broadcast %cst_6 : f32 to vector<8x8xf32>
    %17 = arith.maximumf %15, %16 : vector<8x8xf32>
    %c0_7 = arith.constant 0 : index
    %c0_8 = arith.constant 0 : index
    %18 = vector.load %arg3[%c0_7, %c0_8] : memref<8x8xi8, #tpu.memory_space<vmem>>, vector<8x8xi8>
    %c1_i8 = arith.constant 1 : i8
    %19 = vector.broadcast %c1_i8 : i8 to vector<8x8xi8>
    %20 = arith.andi %18, %19 : vector<8x8xi8>
    %c0_i8 = arith.constant 0 : i8
    %21 = vector.broadcast %c0_i8 : i8 to vector<8x8xi8>
    %22 = arith.cmpi ne, %20, %21 : vector<8x8xi8>
    %c2_i8 = arith.constant 2 : i8
    %23 = vector.broadcast %c2_i8 : i8 to vector<8x8xi8>
    %24 = arith.andi %18, %23 : vector<8x8xi8>
    %c0_i8_9 = arith.constant 0 : i8
    %25 = vector.broadcast %c0_i8_9 : i8 to vector<8x8xi8>
    %26 = arith.cmpi ne, %24, %25 : vector<8x8xi8>
    %cst_10 = arith.constant -1.000000e+00 : f32
    %27 = vector.broadcast %cst_10 : f32 to vector<8x8xf32>
    %28 = arith.select %22, %17, %27 : vector<8x8xi1>, vector<8x8xf32>
    %cst_11 = arith.constant dense<0xFF800000> : vector<8xf32>
    %29 = vector.multi_reduction <maximumf>, %28, %cst_11 [1] : vector<8x8xf32> to vector<8xf32>
    %30 = vector.shape_cast %29 : vector<8xf32> to vector<8x1xf32>
    %cst_12 = arith.constant 0x7F800000 : f32
    %31 = vector.broadcast %cst_12 : f32 to vector<8x8xf32>
    %32 = arith.select %26, %17, %31 : vector<8x8xi1>, vector<8x8xf32>
    %cst_13 = arith.constant dense<0x7F800000> : vector<8xf32>
    %33 = vector.multi_reduction <minimumf>, %32, %cst_13 [1] : vector<8x8xf32> to vector<8xf32>
    %34 = vector.shape_cast %33 : vector<8xf32> to vector<8x1xf32>
    %35 = tpu.iota {dimensions = array<i32: 1>} : vector<1x8xi32>
    %36 = vector.broadcast %30 : vector<8x1xf32> to vector<8x8xf32>
    %37 = arith.cmpf oeq, %28, %36 : vector<8x8xf32>
    %c8_i32_14 = arith.constant 8 : i32
    %38 = vector.shape_cast %35 : vector<1x8xi32> to vector<1x8xi32>
    %39 = vector.broadcast %38 : vector<1x8xi32> to vector<8x8xi32>
    %40 = vector.broadcast %c8_i32_14 : i32 to vector<8x8xi32>
    %41 = arith.select %37, %39, %40 : vector<8x8xi1>, vector<8x8xi32>
    %cst_15 = arith.constant dense<2147483647> : vector<8xi32>
    %42 = vector.multi_reduction <minsi>, %41, %cst_15 [1] : vector<8x8xi32> to vector<8xi32>
    %43 = vector.shape_cast %42 : vector<8xi32> to vector<8x1xi32>
    %44 = vector.broadcast %34 : vector<8x1xf32> to vector<8x8xf32>
    %45 = arith.cmpf oeq, %32, %44 : vector<8x8xf32>
    %c8_i32_16 = arith.constant 8 : i32
    %46 = vector.shape_cast %35 : vector<1x8xi32> to vector<1x8xi32>
    %47 = vector.broadcast %46 : vector<1x8xi32> to vector<8x8xi32>
    %48 = vector.broadcast %c8_i32_16 : i32 to vector<8x8xi32>
    %49 = arith.select %45, %47, %48 : vector<8x8xi1>, vector<8x8xi32>
    %cst_17 = arith.constant dense<2147483647> : vector<8xi32>
    %50 = vector.multi_reduction <minsi>, %49, %cst_17 [1] : vector<8x8xi32> to vector<8xi32>
    %51 = vector.shape_cast %50 : vector<8xi32> to vector<8x1xi32>
    %cst_18 = arith.constant 0.000000e+00 : f32
    %52 = vector.broadcast %cst_18 : f32 to vector<8x1xf32>
    %53 = arith.cmpf oge, %30, %52 : vector<8x1xf32>
    %cst_19 = arith.constant 0x7F800000 : f32
    %54 = vector.broadcast %cst_19 : f32 to vector<8x1xf32>
    %55 = arith.cmpf olt, %34, %54 : vector<8x1xf32>
    %56 = arith.andi %53, %55 : vector<8x1xi1>
    %cst_20 = arith.constant 0.000000e+00 : f32
    %57 = vector.broadcast %cst_20 : f32 to vector<8x1xf32>
    %58 = arith.maximumf %30, %57 : vector<8x1xf32>
    %59 = math.sqrt %58 : vector<8x1xf32>
    %60 = math.sqrt %34 : vector<8x1xf32>
    %cst_21 = arith.constant 0.000000e+00 : f32
    %61 = vector.broadcast %cst_21 : f32 to vector<8x1xf32>
    %62 = arith.sitofp %43 : vector<8x1xi32> to vector<8x1xf32>
    %63 = arith.sitofp %51 : vector<8x1xi32> to vector<8x1xf32>
    %64 = arith.extui %56 : vector<8x1xi1> to vector<8x1xi32>
    %65 = arith.sitofp %64 : vector<8x1xi32> to vector<8x1xf32>
    %66 = tpu.concatenate %59, %60, %62, %63, %65, %61, %61, %61 in 1 : vector<8x1xf32>, vector<8x1xf32>, vector<8x1xf32>, vector<8x1xf32>, vector<8x1xf32>, vector<8x1xf32>, vector<8x1xf32>, vector<8x1xf32> -> vector<8x8xf32>
    %c0_22 = arith.constant 0 : index
    %c0_23 = arith.constant 0 : index
    %67 = vector.load %arg4[%c0_22, %c0_23] : memref<8x8xf32, #tpu.memory_space<vmem>>, vector<8x8xf32>
    tpu.vector_store %arg4[%c0_22, %c0_23], %66 {strides = array<i32>} : memref<8x8xf32, #tpu.memory_space<vmem>>, vector<8x8xf32>,
    return
  }
  func.func @transform_0(%arg0: i32) -> (i32, i32) {
    %c0_i32 = arith.constant 0 : i32
    %c0_i32_0 = arith.constant 0 : i32
    %c0_i32_1 = arith.constant 0 : i32
    return %c0_i32, %c0_i32_0 : i32, i32
  }
  func.func @transform_1(%arg0: i32) -> (i32, i32) {
    %c0_i32 = arith.constant 0 : i32
    %c0_i32_0 = arith.constant 0 : i32
    %c0_i32_1 = arith.constant 0 : i32
    return %c0_i32, %c0_i32_0 : i32, i32
  }
  func.func @transform_2(%arg0: i32) -> (i32, i32) {
    %c0_i32 = arith.constant 0 : i32
    %c0_i32_0 = arith.constant 0 : i32
    return %arg0, %c0_i32 : i32, i32
  }
  func.func @transform_3(%arg0: i32) -> (i32, i32) {
    %c0_i32 = arith.constant 0 : i32
    %c0_i32_0 = arith.constant 0 : i32
    return %arg0, %c0_i32 : i32, i32
  }
}

module attributes {stable_mosaic.version = 11 : i64} {
  func.func @_miner_kernel(%arg0: i32, %arg1: memref<8x128xf32, #tpu.memory_space<vmem>>, %arg2: memref<1x8xf32, #tpu.memory_space<vmem>>, %arg3: memref<8x8xi8, #tpu.memory_space<vmem>>, %arg4: memref<8x8xf32, #tpu.memory_space<vmem>>) attributes {dimension_semantics = [#tpu.dimension_semantics<parallel>], iteration_bounds = array<i64: 1>, scalar_prefetch = 0 : i64, scratch_operands = 0 : i64, tpu.core_type = #tpu.core_type<tc>, window_params = [{pipeline_mode = #tpu.pipeline_mode<synchronous>, transform_indices = @transform_0, window_bounds = array<i64: 8, 128>}, {pipeline_mode = #tpu.pipeline_mode<synchronous>, transform_indices = @transform_1, window_bounds = array<i64: 1, 8>}, {transform_indices = @transform_2, window_bounds = array<i64: 8, 8>}, {transform_indices = @transform_3, window_bounds = array<i64: 8, 8>}]} {
    %c8_i32 = arith.constant 8 : i32
    %0 = arith.muli %arg0, %c8_i32 : i32
    %1 = tpu.assume_multiple %0, 8 : i32
    %2 = arith.index_cast %1 : i32 to index
    %c0 = arith.constant 0 : index
    %3 = vector.load %arg1[%2, %c0] : memref<8x128xf32, #tpu.memory_space<vmem>>, vector<8x128xf32>
    %c0_0 = arith.constant 0 : index
    %c0_1 = arith.constant 0 : index
    %4 = vector.load %arg1[%c0_0, %c0_1] : memref<8x128xf32, #tpu.memory_space<vmem>>, vector<8x128xf32>
    %c0_2 = arith.constant 0 : index
    %c0_3 = arith.constant 0 : index
    %5 = vector.load %arg2[%c0_2, %c0_3] : memref<1x8xf32, #tpu.memory_space<vmem>>, vector<1x8xf32>
    %6 = arith.mulf %3, %3 : vector<8x128xf32>
    %cst = arith.constant dense<0.000000e+00> : vector<8xf32>
    %7 = vector.multi_reduction <add>, %6, %cst [1] : vector<8x128xf32> to vector<8xf32>
    %8 = vector.shape_cast %7 : vector<8xf32> to vector<8x1xf32>
    %cst_4 = arith.constant dense<0.000000e+00> : vector<8x8xf32>
    %9 = tpu.matmul %3, %4, %cst_4 {dimension_numbers = #tpu.dot_dimension_numbers<[1], [1], [0], [0], [0, 0, 1, 0], [], []>} : vector<8x128xf32>, vector<8x128xf32>, vector<8x8xf32> -> vector<8x8xf32>
    %10 = vector.broadcast %8 : vector<8x1xf32> to vector<8x8xf32>
    %11 = vector.broadcast %5 : vector<1x8xf32> to vector<8x8xf32>
    %12 = arith.addf %10, %11 : vector<8x8xf32>
    %cst_5 = arith.constant 2.000000e+00 : f32
    %13 = vector.broadcast %cst_5 : f32 to vector<8x8xf32>
    %14 = arith.mulf %13, %9 : vector<8x8xf32>
    %15 = arith.subf %12, %14 : vector<8x8xf32>
    %cst_6 = arith.constant 0.000000e+00 : f32
    %16 = vector.broadcast %cst_6 : f32 to vector<8x8xf32>
    %17 = arith.maximumf %15, %16 : vector<8x8xf32>
    %c0_7 = arith.constant 0 : index
    %c0_8 = arith.constant 0 : index
    %18 = vector.load %arg3[%c0_7, %c0_8] : memref<8x8xi8, #tpu.memory_space<vmem>>, vector<8x8xi8>
    %c1_i8 = arith.constant 1 : i8
    %19 = vector.broadcast %c1_i8 : i8 to vector<8x8xi8>
    %20 = arith.andi %18, %19 : vector<8x8xi8>
    %c0_i8 = arith.constant 0 : i8
    %21 = vector.broadcast %c0_i8 : i8 to vector<8x8xi8>
    %22 = arith.cmpi ne, %20, %21 : vector<8x8xi8>
    %c2_i8 = arith.constant 2 : i8
    %23 = vector.broadcast %c2_i8 : i8 to vector<8x8xi8>
    %24 = arith.andi %18, %23 : vector<8x8xi8>
    %c0_i8_9 = arith.constant 0 : i8
    %25 = vector.broadcast %c0_i8_9 : i8 to vector<8x8xi8>
    %26 = arith.cmpi ne, %24, %25 : vector<8x8xi8>
    %cst_10 = arith.constant -1.000000e+00 : f32
    %27 = vector.broadcast %cst_10 : f32 to vector<8x8xf32>
    %28 = arith.select %22, %17, %27 : vector<8x8xi1>, vector<8x8xf32>
    %cst_11 = arith.constant dense<0xFF800000> : vector<8xf32>
    %29 = vector.multi_reduction <maximumf>, %28, %cst_11 [1] : vector<8x8xf32> to vector<8xf32>
    %30 = vector.shape_cast %29 : vector<8xf32> to vector<8x1xf32>
    %cst_12 = arith.constant 0x7F800000 : f32
    %31 = vector.broadcast %cst_12 : f32 to vector<8x8xf32>
    %32 = arith.select %26, %17, %31 : vector<8x8xi1>, vector<8x8xf32>
    %cst_13 = arith.constant dense<0x7F800000> : vector<8xf32>
    %33 = vector.multi_reduction <minimumf>, %32, %cst_13 [1] : vector<8x8xf32> to vector<8xf32>
    %34 = vector.shape_cast %33 : vector<8xf32> to vector<8x1xf32>
    %35 = tpu.iota {dimensions = array<i32: 1>} : vector<1x8xi32>
    %36 = vector.broadcast %30 : vector<8x1xf32> to vector<8x8xf32>
    %37 = arith.cmpf oeq, %28, %36 : vector<8x8xf32>
    %c8_i32_14 = arith.constant 8 : i32
    %38 = vector.shape_cast %35 : vector<1x8xi32> to vector<1x8xi32>
    %39 = vector.broadcast %38 : vector<1x8xi32> to vector<8x8xi32>
    %40 = vector.broadcast %c8_i32_14 : i32 to vector<8x8xi32>
    %41 = arith.select %37, %39, %40 : vector<8x8xi1>, vector<8x8xi32>
    %cst_15 = arith.constant dense<2147483647> : vector<8xi32>
    %42 = vector.multi_reduction <minsi>, %41, %cst_15 [1] : vector<8x8xi32> to vector<8xi32>
    %43 = vector.shape_cast %42 : vector<8xi32> to vector<8x1xi32>
    %44 = vector.broadcast %34 : vector<8x1xf32> to vector<8x8xf32>
    %45 = arith.cmpf oeq, %32, %44 : vector<8x8xf32>
    %c8_i32_16 = arith.constant 8 : i32
    %46 = vector.shape_cast %35 : vector<1x8xi32> to vector<1x8xi32>
    %47 = vector.broadcast %46 : vector<1x8xi32> to vector<8x8xi32>
    %48 = vector.broadcast %c8_i32_16 : i32 to vector<8x8xi32>
    %49 = arith.select %45, %47, %48 : vector<8x8xi1>, vector<8x8xi32>
    %cst_17 = arith.constant dense<2147483647> : vector<8xi32>
    %50 = vector.multi_reduction <minsi>, %49, %cst_17 [1] : vector<8x8xi32> to vector<8xi32>
    %51 = vector.shape_cast %50 : vector<8xi32> to vector<8x1xi32>
    %cst_18 = arith.constant 0.000000e+00 : f32
    %52 = vector.broadcast %cst_18 : f32 to vector<8x1xf32>
    %53 = arith.cmpf oge, %30, %52 : vector<8x1xf32>
    %cst_19 = arith.constant 0x7F800000 : f32
    %54 = vector.broadcast %cst_19 : f32 to vector<8x1xf32>
    %55 = arith.cmpf olt, %34, %54 : vector<8x1xf32>
    %56 = arith.andi %53, %55 : vector<8x1xi1>
    %cst_20 = arith.constant 0.000000e+00 : f32
    %57 = vector.broadcast %cst_20 : f32 to vector<8x1xf32>
    %58 = arith.maximumf %30, %57 : vector<8x1xf32>
    %59 = math.sqrt %58 : vector<8x1xf32>
    %60 = math.sqrt %34 : vector<8x1xf32>
    %cst_21 = arith.constant 0.000000e+00 : f32
    %61 = vector.broadcast %cst_21 : f32 to vector<8x1xf32>
    %62 = arith.sitofp %43 : vector<8x1xi32> to vector<8x1xf32>
    %63 = arith.sitofp %51 : vector<8x1xi32> to vector<8x1xf32>
    %64 = arith.extui %56 : vector<8x1xi1> to vector<8x1xi32>
    %65 = arith.sitofp %64 : vector<8x1xi32> to vector<8x1xf32>
    %66 = tpu.concatenate %59, %60, %62, %63, %65, %61, %61, %61 in 1 : vector<8x1xf32>, vector<8x1xf32>, vector<8x1xf32>, vector<8x1xf32>, vector<8x1xf32>, vector<8x1xf32>, vector<8x1xf32>, vector<8x1xf32> -> vector<8x8xf32>
    %c0_22 = arith.constant 0 : index
    %c0_23 = arith.constant 0 : index
    %67 = vector.load %arg4[%c0_22, %c0_23] : memref<8x8xf32, #tpu.memory_space<vmem>>, vector<8x8xf32>
    tpu.vector_store %arg4[%c0_22, %c0_23], %66 {strides = array<i32>} : memref<8x8xf32, #tpu.memory_space<vmem>>, vector<8x8xf32>,
    return
  }
  func.func @transform_0(%arg0: i32) -> (i32, i32) {
    %c0_i32 = arith.constant 0 : i32
    %c0_i32_0 = arith.constant 0 : i32
    %c0_i32_1 = arith.constant 0 : i32
    return %c0_i32, %c0_i32_0 : i32, i32
  }
  func.func @transform_1(%arg0: i32) -> (i32, i32) {
    %c0_i32 = arith.constant 0 : i32
    %c0_i32_0 = arith.constant 0 : i32
    %c0_i32_1 = arith.constant 0 : i32
    return %c0_i32, %c0_i32_0 : i32, i32
  }
  func.func @transform_2(%arg0: i32) -> (i32, i32) {
    %c0_i32 = arith.constant 0 : i32
    %c0_i32_0 = arith.constant 0 : i32
    return %arg0, %c0_i32 : i32, i32
  }
  func.func @transform_3(%arg0: i32) -> (i32, i32) {
    %c0_i32 = arith.constant 0 : i32
    %c0_i32_0 = arith.constant 0 : i32
    return %arg0, %c0_i32 : i32, i32
  }
}

</mosaic_0001>

<llo_original>
// kernel: _fn.1
$region0: #{_fn.1}
  #allocation0 [shape = 'u32[]', space=smem, size = 0x4, offset = 0x4, fixed_abs, tag = 'smem constant byte address 0x4 - core index']
  #allocation1 [shape = 'u32[144,128]{1,0:T(1,128)}', space=vmem, size = 0x12000, scoped, tag = 'internal scratch']
  %s0 = inlined_call_operand.vmem [shape: f32[8,128], index: 0, kind: input, shape index: {}]
  %s1 = inlined_call_operand.vmem [shape: f32[1,8], index: 1, kind: input, shape index: {}]
  %s2 = inlined_call_operand.vmem [shape: s8[8,8], index: 2, kind: input, shape index: {}]
  %s3 = inlined_call_operand.vmem [shape: f32[8,8], index: 3, kind: output, shape index: {}]
  %s4 = sld [smem:[#allocation0]]
  $region22: #{_fn.1} parent=0
    _
  %s6 = ssub.s32 1, %s4
  %s7 = scalar_select 0, %s6, %s4
  // Predicated region
  $region2: #{_fn.1} parent=0 // pred_check
    _
  $region3: #{_fn.1} parent=0 // pred_check_branch
    %9 = sbr.rel (0) target = $region5
  $region4: #{_fn.1} parent=0 // pred_region
    _
  $region5: #{_fn.1} parent=0 // pred_fallthru
    _
  // Predicated region
  $region6: #{_fn.1} parent=0 // pred_check
    _
  $region7: #{_fn.1} parent=0 // pred_check_branch
    %11 = sbr.rel (0) target = $region9
  $region8: #{_fn.1} parent=0 // pred_region
    _
  $region9: #{_fn.1} parent=0 // pred_fallthru
    _
  // Predicated region
  $region10: #{_fn.1} parent=0 // pred_check
    _
  $region11: #{_fn.1} parent=0 // pred_check_branch
    %13 = sbr.rel (0) target = $region13
  $region12: #{_fn.1} parent=0 // pred_region
    _
  $region13: #{_fn.1} parent=0 // pred_fallthru
    _
  %s17 = smul.u32 0, 8
  %s18 = scalar_lea.vmem %s0, %s17
  %v19 = vld [vmem:[%s18] sm:$0xff]
  %v20 = vld [vmem:[%s0] sm:$0xff]
  %v21 = vld [vmem:[%s1] sm:$0x1]
  %v22 = vmul.f32 %v19, %v19
  %23 = vadd.xlane.f32.xlu0 %v22
  %v24 = vpop.xlane.xlu0 %23
  %25 = vmatprep.subr.mxu0 0.0
  %26 = vmatpush1.xpose.msra.mxu0 0.0
  %27 = vmatprep.subr.mxu0 0.0
  %28 = vmatpush1.xpose.msra.mxu0 0.0
  %29 = vmatprep.subr.mxu0 0.0
  %30 = vmatpush1.xpose.msra.mxu0 0.0
  %31 = vmatprep.subr.mxu0 0.0
  %32 = vmatpush1.xpose.msra.mxu0 0.0
  %33 = vmatprep.subr.mxu0 0.0
  %34 = vmatpush1.xpose.msra.mxu0 0.0
  %35 = vmatprep.subr.mxu0 0.0
  %36 = vmatpush1.xpose.msra.mxu0 0.0
  %37 = vmatprep.subr.mxu0 0.0
  %38 = vmatpush1.xpose.msra.mxu0 0.0
  %39 = vmatprep.subr.mxu0 0.0
  %40 = vmatpush1.xpose.msra.mxu0 0.0
  %41 = vmatprep.subr.mxu0 0.0
  %42 = vmatpush1.xpose.msra.mxu0 0.0
  %43 = vmatprep.subr.mxu0 0.0
  %44 = vmatpush1.xpose.msra.mxu0 0.0
  %45 = vmatprep.subr.mxu0 0.0
  %46 = vmatpush1.xpose.msra.mxu0 0.0
  %47 = vmatprep.subr.mxu0 0.0
  %48 = vmatpush1.xpose.msra.mxu0 0.0
  %49 = vmatprep.subr.mxu0 0.0
  %50 = vmatpush1.xpose.msra.mxu0 0.0
  %51 = vmatprep.subr.mxu0 0.0
  %52 = vmatpush1.xpose.msra.mxu0 0.0
  %53 = vmatprep.subr.mxu0 0.0
  %54 = vmatpush1.xpose.msra.mxu0 0.0
  %55 = vmatprep.subr.mxu0 0.0
  %56 = vmatpush1.xpose.msra.mxu0 %v20
  %57 = vmatprep.subr.mxu0 0.0
  %58 = vmatpush2.xpose.msra.mxu0 0.0
  %59 = vmatprep.subr.mxu0 0.0
  %60 = vmatpush2.xpose.msra.mxu0 0.0
  %61 = vmatprep.subr.mxu0 0.0
  %62 = vmatpush2.xpose.msra.mxu0 0.0
  %63 = vmatprep.subr.mxu0 0.0
  %64 = vmatpush2.xpose.msra.mxu0 0.0
  %65 = vmatprep.subr.mxu0 0.0
  %66 = vmatpush2.xpose.msra.mxu0 0.0
  %67 = vmatprep.subr.mxu0 0.0
  %68 = vmatpush2.xpose.msra.mxu0 0.0
  %69 = vmatprep.subr.mxu0 0.0
  %70 = vmatpush2.xpose.msra.mxu0 0.0
  %71 = vmatprep.subr.mxu0 0.0
  %72 = vmatpush2.xpose.msra.mxu0 0.0
  %73 = vmatprep.subr.mxu0 0.0
  %74 = vmatpush2.xpose.msra.mxu0 0.0
  %75 = vmatprep.subr.mxu0 0.0
  %76 = vmatpush2.xpose.msra.mxu0 0.0
  %77 = vmatprep.subr.mxu0 0.0
  %78 = vmatpush2.xpose.msra.mxu0 0.0
  %79 = vmatprep.subr.mxu0 0.0
  %80 = vmatpush2.xpose.msra.mxu0 0.0
  %81 = vmatprep.subr.mxu0 0.0
  %82 = vmatpush2.xpose.msra.mxu0 0.0
  %83 = vmatprep.subr.mxu0 0.0
  %84 = vmatpush2.xpose.msra.mxu0 0.0
  %85 = vmatprep.subr.mxu0 0.0
  %86 = vmatpush2.xpose.msra.mxu0 0.0
  %87 = vmatprep.subr.mxu0 0.0
  %88 = vmatpush2.xpose.msra.mxu0 0.0
  %89 = vmatprep.mubr.f32.mxu0 0.0
  %90 = vmatmul.mubr.f32.gmra.mxu0 %v19
  %v91 = vpop.f32.mrf.mxu0
  %v92 = vadd.f32 0.0, %v91
  %v93 = vpop.f32.mrf.mxu0
  %94 = vdwg.mxu0
  %v96 = vlaneseq
  %v97 = vshrl.u32 %v96, 7
  %v98 = vsub.s32 0, %v97
  %v99 = vrot.slane %v21, %v98
  %v101 = vadd.f32 %v24, %v99
  %v102 = vmul.f32 %v92, 2.0
  %v103 = vsub.f32 %v101, %v102
  %v104 = vmax.f32 %v103, 0.0
  %v105 = vld [vmem:[%s2] sm:$0x3]
  %v106 = vand.u32 %v105, 16843009
  %vm107 = vnez %v106
  %v108 = vand.u32 %v105, 33686018
  %vm109 = vnez %v108
  %v110 = vsel %vm107, 16843009, 0
  %v111 = vunpack.c.0.s8 %v110
  %vm112 = vcmp.ne.s32.totalorder %v111, 0
  %v113 = vsel %vm112, %v104, -1.0
  %vm114 = vcmask 64512
  %v115 = vsel %vm114, %v113, -inf
  %116 = vmax.xlane.f32.xlu0 %v115
  %v117 = vpop.xlane.xlu0 %116
  %v118 = vsel %vm109, 16843009, 0
  %v119 = vunpack.c.0.s8 %v118
  %vm120 = vcmp.ne.s32.totalorder %v119, 0
  %v121 = vsel %vm120, %v104, inf
  %v122 = vsel %vm114, %v121, inf
  %123 = vmin.xlane.f32.xlu0 %v122
  %v124 = vpop.xlane.xlu0 %123
  %v125 = vlaneseq
  %v126 = vand.u32 %v125, 127
  %vm127 = vcmp.eq.f32.partialorder %v113, %v117
  %v128 = vsel %vm127, %v126, 8
  %v129 = vsel %vm114, %v128, 2147483647
  %v130 = vand.u32 %v129, 65535
  %v131 = vshra.s32 %v129, 16
  %v132 = vcvt.s32.f32 %v130
  %v133 = vcvt.s32.f32 %v131
  %134 = vmin.xlane.f32.xlu0 %v133
  %v135 = vpop.xlane.xlu0 %134
  %vm136 = vcmp.eq.f32.partialorder %v133, %v135
  %v137 = vsel %vm136, %v132, inf
  %138 = vmin.xlane.f32.xlu0 %v137
  %v139 = vpop.xlane.xlu0 %138
  %v140 = vcvt.f32.s32 %v139
  %v141 = vcvt.f32.s32 %v135
  %v142 = vshll.u32 %v141, 16
  %v143 = vadd.s32 %v142, %v140
  %vm144 = vcmp.eq.f32.partialorder %v121, %v124
  %v145 = vsel %vm144, %v126, 8
  %v146 = vsel %vm114, %v145, 2147483647
  %v147 = vand.u32 %v146, 65535
  %v148 = vshra.s32 %v146, 16
  %v149 = vcvt.s32.f32 %v147
  %v150 = vcvt.s32.f32 %v148
  %151 = vmin.xlane.f32.xlu0 %v150
  %v152 = vpop.xlane.xlu0 %151
  %vm153 = vcmp.eq.f32.partialorder %v150, %v152
  %v154 = vsel %vm153, %v149, inf
  %155 = vmin.xlane.f32.xlu0 %v154
  %v156 = vpop.xlane.xlu0 %155
  %v157 = vcvt.f32.s32 %v156
  %v158 = vcvt.f32.s32 %v152
  %v159 = vshll.u32 %v158, 16
  %v160 = vadd.s32 %v159, %v157
  %vm161 = vcmp.ge.f32.partialorder %v117, 0.0
  %vm162 = vcmp.lt.f32.partialorder %v124, inf
  %vm163 = vmand %vm161, %vm162
  %v164 = vmax.f32 %v117, 0.0
  %v165 = vrsqrt.pop %v164
  %v166 = vmul.f32 %v164, %v165
  %vm167 = vcmp.eq.f32.partialorder %v164, inf
  %v168 = vsel %vm167, %v164, %v166
  %vm169 = vcmp.eq.f32.partialorder %v164, 0.0
  %v170 = vand.u32 %v164, 2147483648
  %v171 = vsel %vm169, %v170, %v168
  %v172 = vrsqrt.pop %v124
  %v173 = vmul.f32 %v124, %v172
  %vm174 = vcmp.eq.f32.partialorder %v124, inf
  %v175 = vsel %vm174, %v124, %v173
  %vm176 = vcmp.eq.f32.partialorder %v124, 0.0
  %v177 = vand.u32 %v124, 2147483648
  %v178 = vsel %vm176, %v177, %v175
  %v179 = vcvt.s32.f32 %v143
  %v180 = vcvt.s32.f32 %v160
  %v181 = vsel %vm163, 1, 0
  %v182 = vcvt.s32.f32 %v181
  %vm183 = vcmask 7168
  %v184 = vsel %vm183, %v171, %v178
  %vm185 = vcmask 15360
  %v186 = vsel %vm185, %v184, %v179
  %vm187 = vcmask 23552
  %v188 = vsel %vm187, %v186, %v180
  %vm189 = vcmask 31744
  %v190 = vsel %vm189, %v188, %v182
  %vm191 = vcmask 39936
  %v192 = vsel %vm191, %v190, 0.0
  %vm193 = vcmask 48128
  %v194 = vsel %vm193, %v192, 0.0
  %vm195 = vcmask 56320
  %v196 = vsel %vm195, %v194, 0.0
  %197 = vst.msk [vmem:[%s3] sm:$0xff] %vm114, %v196
  // Predicated region
  $region14: #{_fn.1} parent=0 // pred_check
    _
  $region15: #{_fn.1} parent=0 // pred_check_branch
    %199 = sbr.rel (0) target = $region17
  $region16: #{_fn.1} parent=0 // pred_region
    _
  $region17: #{_fn.1} parent=0 // pred_fallthru
    _
  // Predicated region
  $region18: #{_fn.1} parent=0 // pred_check
    _
  $region19: #{_fn.1} parent=0 // pred_check_branch
    %201 = sbr.rel (0) target = $region21
  $region20: #{_fn.1} parent=0 // pred_region
    _
  $region21: #{_fn.1} parent=0 // pred_fallthru
    _

// kernel: _fn.1
$region0: #{_fn.1}
  #allocation0 [shape = 'u32[]', space=smem, size = 0x4, offset = 0x4, fixed_abs, tag = 'smem constant byte address 0x4 - core index']
  #allocation1 [shape = 'u32[144,128]{1,0:T(1,128)}', space=vmem, size = 0x12000, scoped, tag = 'internal scratch']
  %s0 = inlined_call_operand.vmem [shape: f32[8,128], index: 0, kind: input, shape index: {}]
  %s1 = inlined_call_operand.vmem [shape: f32[1,8], index: 1, kind: input, shape index: {}]
  %s2 = inlined_call_operand.vmem [shape: s8[8,8], index: 2, kind: input, shape index: {}]
  %s3 = inlined_call_operand.vmem [shape: f32[8,8], index: 3, kind: output, shape index: {}]
  %s4 = sld [smem:[#allocation0]]
  $region22: #{_fn.1} parent=0
    _
  %s6 = ssub.s32 1, %s4
  %s7 = scalar_select 0, %s6, %s4
  // Predicated region
  $region2: #{_fn.1} parent=0 // pred_check
    _
  $region3: #{_fn.1} parent=0 // pred_check_branch
    %9 = sbr.rel (0) target = $region5
  $region4: #{_fn.1} parent=0 // pred_region
    _
  $region5: #{_fn.1} parent=0 // pred_fallthru
    _
  // Predicated region
  $region6: #{_fn.1} parent=0 // pred_check
    _
  $region7: #{_fn.1} parent=0 // pred_check_branch
    %11 = sbr.rel (0) target = $region9
  $region8: #{_fn.1} parent=0 // pred_region
    _
  $region9: #{_fn.1} parent=0 // pred_fallthru
    _
  // Predicated region
  $region10: #{_fn.1} parent=0 // pred_check
    _
  $region11: #{_fn.1} parent=0 // pred_check_branch
    %13 = sbr.rel (0) target = $region13
  $region12: #{_fn.1} parent=0 // pred_region
    _
  $region13: #{_fn.1} parent=0 // pred_fallthru
    _
  %s17 = smul.u32 0, 8
  %s18 = scalar_lea.vmem %s0, %s17
  %v19 = vld [vmem:[%s18] sm:$0xff]
  %v20 = vld [vmem:[%s0] sm:$0xff]
  %v21 = vld [vmem:[%s1] sm:$0x1]
  %v22 = vmul.f32 %v19, %v19
  %23 = vadd.xlane.f32.xlu0 %v22
  %v24 = vpop.xlane.xlu0 %23
  %25 = vmatprep.subr.mxu0 0.0
  %26 = vmatpush1.xpose.msra.mxu0 0.0
  %27 = vmatprep.subr.mxu0 0.0
  %28 = vmatpush1.xpose.msra.mxu0 0.0
  %29 = vmatprep.subr.mxu0 0.0
  %30 = vmatpush1.xpose.msra.mxu0 0.0
  %31 = vmatprep.subr.mxu0 0.0
  %32 = vmatpush1.xpose.msra.mxu0 0.0
  %33 = vmatprep.subr.mxu0 0.0
  %34 = vmatpush1.xpose.msra.mxu0 0.0
  %35 = vmatprep.subr.mxu0 0.0
  %36 = vmatpush1.xpose.msra.mxu0 0.0
  %37 = vmatprep.subr.mxu0 0.0
  %38 = vmatpush1.xpose.msra.mxu0 0.0
  %39 = vmatprep.subr.mxu0 0.0
  %40 = vmatpush1.xpose.msra.mxu0 0.0
  %41 = vmatprep.subr.mxu0 0.0
  %42 = vmatpush1.xpose.msra.mxu0 0.0
  %43 = vmatprep.subr.mxu0 0.0
  %44 = vmatpush1.xpose.msra.mxu0 0.0
  %45 = vmatprep.subr.mxu0 0.0
  %46 = vmatpush1.xpose.msra.mxu0 0.0
  %47 = vmatprep.subr.mxu0 0.0
  %48 = vmatpush1.xpose.msra.mxu0 0.0
  %49 = vmatprep.subr.mxu0 0.0
  %50 = vmatpush1.xpose.msra.mxu0 0.0
  %51 = vmatprep.subr.mxu0 0.0
  %52 = vmatpush1.xpose.msra.mxu0 0.0
  %53 = vmatprep.subr.mxu0 0.0
  %54 = vmatpush1.xpose.msra.mxu0 0.0
  %55 = vmatprep.subr.mxu0 0.0
  %56 = vmatpush1.xpose.msra.mxu0 %v20
  %57 = vmatprep.subr.mxu0 0.0
  %58 = vmatpush2.xpose.msra.mxu0 0.0
  %59 = vmatprep.subr.mxu0 0.0
  %60 = vmatpush2.xpose.msra.mxu0 0.0
  %61 = vmatprep.subr.mxu0 0.0
  %62 = vmatpush2.xpose.msra.mxu0 0.0
  %63 = vmatprep.subr.mxu0 0.0
  %64 = vmatpush2.xpose.msra.mxu0 0.0
  %65 = vmatprep.subr.mxu0 0.0
  %66 = vmatpush2.xpose.msra.mxu0 0.0
  %67 = vmatprep.subr.mxu0 0.0
  %68 = vmatpush2.xpose.msra.mxu0 0.0
  %69 = vmatprep.subr.mxu0 0.0
  %70 = vmatpush2.xpose.msra.mxu0 0.0
  %71 = vmatprep.subr.mxu0 0.0
  %72 = vmatpush2.xpose.msra.mxu0 0.0
  %73 = vmatprep.subr.mxu0 0.0
  %74 = vmatpush2.xpose.msra.mxu0 0.0
  %75 = vmatprep.subr.mxu0 0.0
  %76 = vmatpush2.xpose.msra.mxu0 0.0
  %77 = vmatprep.subr.mxu0 0.0
  %78 = vmatpush2.xpose.msra.mxu0 0.0
  %79 = vmatprep.subr.mxu0 0.0
  %80 = vmatpush2.xpose.msra.mxu0 0.0
  %81 = vmatprep.subr.mxu0 0.0
  %82 = vmatpush2.xpose.msra.mxu0 0.0
  %83 = vmatprep.subr.mxu0 0.0
  %84 = vmatpush2.xpose.msra.mxu0 0.0
  %85 = vmatprep.subr.mxu0 0.0
  %86 = vmatpush2.xpose.msra.mxu0 0.0
  %87 = vmatprep.subr.mxu0 0.0
  %88 = vmatpush2.xpose.msra.mxu0 0.0
  %89 = vmatprep.mubr.f32.mxu0 0.0
  %90 = vmatmul.mubr.f32.gmra.mxu0 %v19
  %v91 = vpop.f32.mrf.mxu0
  %v92 = vadd.f32 0.0, %v91
  %v93 = vpop.f32.mrf.mxu0
  %94 = vdwg.mxu0
  %v96 = vlaneseq
  %v97 = vshrl.u32 %v96, 7
  %v98 = vsub.s32 0, %v97
  %v99 = vrot.slane %v21, %v98
  %v101 = vadd.f32 %v24, %v99
  %v102 = vmul.f32 %v92, 2.0
  %v103 = vsub.f32 %v101, %v102
  %v104 = vmax.f32 %v103, 0.0
  %v105 = vld [vmem:[%s2] sm:$0x3]
  %v106 = vand.u32 %v105, 16843009
  %vm107 = vnez %v106
  %v108 = vand.u32 %v105, 33686018
  %vm109 = vnez %v108
  %v110 = vsel %vm107, 16843009, 0
  %v111 = vunpack.c.0.s8 %v110
  %vm112 = vcmp.ne.s32.totalorder %v111, 0
  %v113 = vsel %vm112, %v104, -1.0
  %vm114 = vcmask 64512
  %v115 = vsel %vm114, %v113, -inf
  %116 = vmax.xlane.f32.xlu0 %v115
  %v117 = vpop.xlane.xlu0 %116
  %v118 = vsel %vm109, 16843009, 0
  %v119 = vunpack.c.0.s8 %v118
  %vm120 = vcmp.ne.s32.totalorder %v119, 0
  %v121 = vsel %vm120, %v104, inf
  %v122 = vsel %vm114, %v121, inf
  %123 = vmin.xlane.f32.xlu0 %v122
  %v124 = vpop.xlane.xlu0 %123
  %v125 = vlaneseq
  %v126 = vand.u32 %v125, 127
  %vm127 = vcmp.eq.f32.partialorder %v113, %v117
  %v128 = vsel %vm127, %v126, 8
  %v129 = vsel %vm114, %v128, 2147483647
  %v130 = vand.u32 %v129, 65535
  %v131 = vshra.s32 %v129, 16
  %v132 = vcvt.s32.f32 %v130
  %v133 = vcvt.s32.f32 %v131
  %134 = vmin.xlane.f32.xlu0 %v133
  %v135 = vpop.xlane.xlu0 %134
  %vm136 = vcmp.eq.f32.partialorder %v133, %v135
  %v137 = vsel %vm136, %v132, inf
  %138 = vmin.xlane.f32.xlu0 %v137
  %v139 = vpop.xlane.xlu0 %138
  %v140 = vcvt.f32.s32 %v139
  %v141 = vcvt.f32.s32 %v135
  %v142 = vshll.u32 %v141, 16
  %v143 = vadd.s32 %v142, %v140
  %vm144 = vcmp.eq.f32.partialorder %v121, %v124
  %v145 = vsel %vm144, %v126, 8
  %v146 = vsel %vm114, %v145, 2147483647
  %v147 = vand.u32 %v146, 65535
  %v148 = vshra.s32 %v146, 16
  %v149 = vcvt.s32.f32 %v147
  %v150 = vcvt.s32.f32 %v148
  %151 = vmin.xlane.f32.xlu0 %v150
  %v152 = vpop.xlane.xlu0 %151
  %vm153 = vcmp.eq.f32.partialorder %v150, %v152
  %v154 = vsel %vm153, %v149, inf
  %155 = vmin.xlane.f32.xlu0 %v154
  %v156 = vpop.xlane.xlu0 %155
  %v157 = vcvt.f32.s32 %v156
  %v158 = vcvt.f32.s32 %v152
  %v159 = vshll.u32 %v158, 16
  %v160 = vadd.s32 %v159, %v157
  %vm161 = vcmp.ge.f32.partialorder %v117, 0.0
  %vm162 = vcmp.lt.f32.partialorder %v124, inf
  %vm163 = vmand %vm161, %vm162
  %v164 = vmax.f32 %v117, 0.0
  %v165 = vrsqrt.pop %v164
  %v166 = vmul.f32 %v164, %v165
  %vm167 = vcmp.eq.f32.partialorder %v164, inf
  %v168 = vsel %vm167, %v164, %v166
  %vm169 = vcmp.eq.f32.partialorder %v164, 0.0
  %v170 = vand.u32 %v164, 2147483648
  %v171 = vsel %vm169, %v170, %v168
  %v172 = vrsqrt.pop %v124
  %v173 = vmul.f32 %v124, %v172
  %vm174 = vcmp.eq.f32.partialorder %v124, inf
  %v175 = vsel %vm174, %v124, %v173
  %vm176 = vcmp.eq.f32.partialorder %v124, 0.0
  %v177 = vand.u32 %v124, 2147483648
  %v178 = vsel %vm176, %v177, %v175
  %v179 = vcvt.s32.f32 %v143
  %v180 = vcvt.s32.f32 %v160
  %v181 = vsel %vm163, 1, 0
  %v182 = vcvt.s32.f32 %v181
  %vm183 = vcmask 7168
  %v184 = vsel %vm183, %v171, %v178
  %vm185 = vcmask 15360
  %v186 = vsel %vm185, %v184, %v179
  %vm187 = vcmask 23552
  %v188 = vsel %vm187, %v186, %v180
  %vm189 = vcmask 31744
  %v190 = vsel %vm189, %v188, %v182
  %vm191 = vcmask 39936
  %v192 = vsel %vm191, %v190, 0.0
  %vm193 = vcmask 48128
  %v194 = vsel %vm193, %v192, 0.0
  %vm195 = vcmask 56320
  %v196 = vsel %vm195, %v194, 0.0
  %197 = vst.msk [vmem:[%s3] sm:$0xff] %vm114, %v196
  // Predicated region
  $region14: #{_fn.1} parent=0 // pred_check
    _
  $region15: #{_fn.1} parent=0 // pred_check_branch
    %199 = sbr.rel (0) target = $region17
  $region16: #{_fn.1} parent=0 // pred_region
    _
  $region17: #{_fn.1} parent=0 // pred_fallthru
    _
  // Predicated region
  $region18: #{_fn.1} parent=0 // pred_check
    _
  $region19: #{_fn.1} parent=0 // pred_check_branch
    %201 = sbr.rel (0) target = $region21
  $region20: #{_fn.1} parent=0 // pred_region
    _
  $region21: #{_fn.1} parent=0 // pred_fallthru
    _

</llo_original>
